<compile_context>
chip_gen: v7x
topology: tpu7x:2x2x1
jax: 0.10.0
libtpu: 0.0.40
codegen_flags: <defaults>
</compile_context>

<pallas_src>
import jax
import jax.numpy as jnp
from jax import lax
from jax.experimental import pallas as pl
from jax.experimental.pallas import tpu as pltpu


def _linear_kernel(x_ref, wt_ref, b_ref, o_ref):
    # x_ref : (tm, in_dim)       activations, f32 (straight from HBM)
    # wt_ref: (out_dim, in_dim)  transposed weight, bf16 (tiny)
    # b_ref : (out_dim, 1)       bias, f32
    # o_ref : (out_dim, tm)      lane-dense output tile, f32
    x_bf16 = x_ref[...].astype(wt_ref.dtype)        # in-kernel cast (VPU, free)
    # Contract the minor (feature) dims of both operands on the MXU:
    #   (out_dim, in_dim) . (tm, in_dim)^T -> (out_dim, tm)
    acc = lax.dot_general(
        wt_ref[...], x_bf16,
        dimension_numbers=(((1,), (1,)), ((), ())),
        preferred_element_type=jnp.float32,
    )
    o_ref[...] = (acc + b_ref[...]).astype(o_ref.dtype)


def _round_up(x, m):
    return (x + m - 1) // m * m


def neighbor_prediction(x, w, b, *, tm=8192, min_pallas_batch=1024):
    """Pallas implementation of NeighborPrediction.forward.

    x: (B, 2*dim) float32
    w: (2*dim, 2) float32     (== torch linear.weight.T)
    b: (2,)       float32
    returns (B, 2) float32 logits
    """
    B, in_dim = x.shape
    in_dim_w, out_dim = w.shape
    assert in_dim == in_dim_w

    # Tiny / mid-size batches: a single partially-filled huge tile can't
    # pipeline and the pallas_call prologue dominates -> let XLA fuse the dot.
    if B < min_pallas_batch:
        return (x @ w + b).astype(jnp.float32)

    # Effective tile: large (multiple of 128 for the lane-dense output),
    # clipped to the batch so small batches don't allocate oversized buffers.
    tm_eff = max(128, min(_round_up(tm, 128), _round_up(B, 128)))
    num_tiles = pl.cdiv(B, tm_eff)

    # Tiny parameter tensors: casting / transposing these in the wrapper is
    # negligible (out_dim * in_dim elements).
    wt = w.T.astype(jnp.bfloat16)                    # (out_dim, in_dim)
    b2d = b.astype(jnp.float32).reshape(out_dim, 1)  # (out_dim, 1)

    # VMEM budget: x tile double-buffered + lane-dense output double-buffered
    # + params + headroom.  Capped under v7x's 64 MiB physical VMEM.
    x_tile_bytes = tm_eff * in_dim * x.dtype.itemsize
    o_tile_bytes = out_dim * tm_eff * 4
    vmem_limit = min(2 * x_tile_bytes + 2 * o_tile_bytes + (8 << 20), 48 << 20)

    cost = pl.CostEstimate(
        flops=2 * B * in_dim * out_dim,
        transcendentals=0,
        bytes_accessed=(B * in_dim * x.dtype.itemsize   # x read (f32)
                        + in_dim * out_dim * 2          # weights (bf16)
                        + B * out_dim * 4),             # y write (f32)
    )

    y_t = pl.pallas_call(
        _linear_kernel,
        out_shape=jax.ShapeDtypeStruct((out_dim, B), jnp.float32),
        grid_spec=pltpu.PrefetchScalarGridSpec(
            num_scalar_prefetch=0,
            grid=(num_tiles,),
            in_specs=[
                # Batch tile; feature dim taken in full.  The last tile may
                # overhang B -- Pallas partial-block handling covers it.
                pl.BlockSpec((tm_eff, in_dim), lambda i: (i, 0)),
                # Weights / bias are tiny: same full block for every tile.
                pl.BlockSpec((out_dim, in_dim), lambda i: (0, 0)),
                pl.BlockSpec((out_dim, 1), lambda i: (0, 0)),
            ],
            out_specs=pl.BlockSpec((out_dim, tm_eff), lambda i: (0, i)),
        ),
        compiler_params=pltpu.CompilerParams(
            dimension_semantics=("parallel",),
            vmem_limit_bytes=vmem_limit,
        ),
        cost_estimate=cost,
    )(x, wt, b2d)

    # Layout plumbing back to the module's (B, 2) convention.  This is a tiny
    # (2, B) -> (B, 2) pass; drop it if the consumer accepts (2, B).
    return y_t.T


def _reference(x, w, b):
    return x @ w + b


if __name__ == "__main__":
    # Shapes consistent with the module: dim=32 -> in_features=64, 2 logits.
    dim = 32
    in_features = dim * 2
    out_features = 2

    key = jax.random.PRNGKey(0)
    kx, kw, kb = jax.random.split(key, 3)

    # Deterministic init mimicking torch.nn.Linear (uniform +-1/sqrt(fan_in)).
    bound = 1.0 / jnp.sqrt(jnp.float32(in_features))
    w = jax.random.uniform(kw, (in_features, out_features), jnp.float32,
                           minval=-bound, maxval=bound)
    b = jax.random.uniform(kb, (out_features,), jnp.float32,
                           minval=-bound, maxval=bound)

    # --- Test 1: single-tile Pallas path (batch exactly one 512-row tile). ---
    batch = 512
    x = jax.random.normal(kx, (batch, in_features), jnp.float32)
    y = jax.block_until_ready(neighbor_prediction(x, w, b, min_pallas_batch=0))
    y_ref = _reference(x, w, b)
    assert y.shape == (batch, out_features)
    # bf16 MXU inputs with f32 accumulation -> slightly loosened tolerance.
    assert jnp.allclose(y, y_ref, atol=3e-2, rtol=2e-2), "mismatch (single tile)"

    # --- Test 2: multi-tile grid with an overhanging (partial) last tile. ---
    batch2 = 1280
    x2 = jax.random.normal(jax.random.fold_in(kx, 1),
                           (batch2, in_features), jnp.float32)
    y2 = jax.block_until_ready(
        neighbor_prediction(x2, w, b, tm=512, min_pallas_batch=0))
    assert y2.shape == (batch2, out_features)
    assert jnp.allclose(y2, _reference(x2, w, b), atol=3e-2, rtol=2e-2), \
        "mismatch (multi-tile / partial last tile)"

    # --- Test 3: tiny batch takes the XLA fallback path (pure f32). ---
    x3 = x[:4]
    y3 = jax.block_until_ready(neighbor_prediction(x3, w, b))
    assert y3.shape == (4, out_features)
    assert jnp.allclose(y3, _reference(x3, w, b), atol=1e-5, rtol=1e-5), \
        "mismatch (fallback path)"

    print("KERNEL_OK")
</pallas_src>

<mosaic_0001>
module attributes {stable_mosaic.version = 11 : i64} {
  func.func @_linear_kernel(%arg0: i32, %arg1: memref<512x64xf32, #tpu.memory_space<vmem>>, %arg2: memref<2x64xbf16, #tpu.memory_space<vmem>>, %arg3: memref<2x1xf32, #tpu.memory_space<vmem>>, %arg4: memref<2x512xf32, #tpu.memory_space<vmem>>) attributes {dimension_semantics = [#tpu.dimension_semantics<parallel>], iteration_bounds = array<i64: 1>, scalar_prefetch = 0 : i64, scratch_operands = 0 : i64, tpu.core_type = #tpu.core_type<tc>, window_params = [{transform_indices = @transform_0, window_bounds = array<i64: 512, 64>}, {pipeline_mode = #tpu.pipeline_mode<synchronous>, transform_indices = @transform_1, window_bounds = array<i64: 2, 64>}, {pipeline_mode = #tpu.pipeline_mode<synchronous>, transform_indices = @transform_2, window_bounds = array<i64: 2, 1>}, {transform_indices = @transform_3, window_bounds = array<i64: 2, 512>}]} {
    %c0 = arith.constant 0 : index
    %c0_0 = arith.constant 0 : index
    %0 = vector.load %arg1[%c0, %c0_0] : memref<512x64xf32, #tpu.memory_space<vmem>>, vector<512x64xf32>
    %1 = arith.truncf %0 : vector<512x64xf32> to vector<512x64xbf16>
    %c0_1 = arith.constant 0 : index
    %c0_2 = arith.constant 0 : index
    %2 = vector.load %arg2[%c0_1, %c0_2] : memref<2x64xbf16, #tpu.memory_space<vmem>>, vector<2x64xbf16>
    %cst = arith.constant dense<0.000000e+00> : vector<2x512xf32>
    %3 = tpu.matmul %2, %1, %cst {dimension_numbers = #tpu.dot_dimension_numbers<[1], [1], [0], [0], [0, 0, 1, 0], [], []>} : vector<2x64xbf16>, vector<512x64xbf16>, vector<2x512xf32> -> vector<2x512xf32>
    %c0_3 = arith.constant 0 : index
    %c0_4 = arith.constant 0 : index
    %4 = vector.load %arg3[%c0_3, %c0_4] : memref<2x1xf32, #tpu.memory_space<vmem>>, vector<2x1xf32>
    %5 = vector.broadcast %4 : vector<2x1xf32> to vector<2x512xf32>
    %6 = arith.addf %3, %5 : vector<2x512xf32>
    %c0_5 = arith.constant 0 : index
    %c0_6 = arith.constant 0 : index
    %7 = vector.load %arg4[%c0_5, %c0_6] : memref<2x512xf32, #tpu.memory_space<vmem>>, vector<2x512xf32>
    tpu.vector_store %arg4[%c0_5, %c0_6], %6 {strides = array<i32>} : memref<2x512xf32, #tpu.memory_space<vmem>>, vector<2x512xf32>,
    return
  }
  func.func @transform_0(%arg0: i32) -> (i32, i32) {
    %c0_i32 = arith.constant 0 : i32
    %c0_i32_0 = arith.constant 0 : i32
    return %arg0, %c0_i32 : i32, i32
  }
  func.func @transform_1(%arg0: i32) -> (i32, i32) {
    %c0_i32 = arith.constant 0 : i32
    %c0_i32_0 = arith.constant 0 : i32
    %c0_i32_1 = arith.constant 0 : i32
    return %c0_i32, %c0_i32_0 : i32, i32
  }
  func.func @transform_2(%arg0: i32) -> (i32, i32) {
    %c0_i32 = arith.constant 0 : i32
    %c0_i32_0 = arith.constant 0 : i32
    %c0_i32_1 = arith.constant 0 : i32
    return %c0_i32, %c0_i32_0 : i32, i32
  }
  func.func @transform_3(%arg0: i32) -> (i32, i32) {
    %c0_i32 = arith.constant 0 : i32
    %c0_i32_0 = arith.constant 0 : i32
    return %c0_i32, %arg0 : i32, i32
  }
}

</mosaic_0001>

<llo_original>
// kernel: tpu_custom_call.1
$region0: #{tpu_custom_call.1}
  #allocation0 [shape = 'u32[]', space=smem, size = 0x4, offset = 0x4, fixed_abs, tag = 'smem constant byte address 0x4 - core index']
  #allocation1 [shape = 'u32[144,128]{1,0:T(1,128)}', space=vmem, size = 0x12000, scoped, tag = 'internal scratch']
  %s0 = inlined_call_operand.vmem [shape: f32[512,64], index: 0, kind: input, shape index: {}]
  %s1 = inlined_call_operand.vmem [shape: bf16[2,64], index: 1, kind: input, shape index: {}]
  %s2 = inlined_call_operand.vmem [shape: f32[2,1], index: 2, kind: input, shape index: {}]
  %s3 = inlined_call_operand.hbm [shape: f32[2,512], index: 3, kind: output, shape index: {}]
  %s4 = sld [smem:[#allocation0]]
  $region22: #{tpu_custom_call.1} parent=0
    _
  %s6 = ssub.s32 1, %s4
  %s7 = scalar_select 0, %s6, %s4
  $region1: #{tpu_custom_call.1} parent=0
    #allocation2 [shape = 'u8[4096]{0}', space=vmem, size = 0x1000, scoped, tag = 'output window, operand 0, single buffered']
    #allocation3 [shape = 's32[1]{0}', space=sflag, size = 0x4, scoped, tag = 'scoped memory for tpu_custom_call.1']
    %8 = vsyncpa [#allocation3], 0
    // Predicated region
    $region2: #{tpu_custom_call.1} parent=1 // pred_check
      _
    $region3: #{tpu_custom_call.1} parent=1 // pred_check_branch
      %10 = sbr.rel (0) target = $region5
    $region4: #{tpu_custom_call.1} parent=1 // pred_region
      _
    $region5: #{tpu_custom_call.1} parent=1 // pred_fallthru
      _
    // Predicated region
    $region6: #{tpu_custom_call.1} parent=1 // pred_check
      _
    $region7: #{tpu_custom_call.1} parent=1 // pred_check_branch
      %12 = sbr.rel (0) target = $region9
    $region8: #{tpu_custom_call.1} parent=1 // pred_region
      _
    $region9: #{tpu_custom_call.1} parent=1 // pred_fallthru
      _
    // Predicated region
    $region10: #{tpu_custom_call.1} parent=1 // pred_check
      _
    $region11: #{tpu_custom_call.1} parent=1 // pred_check_branch
      %14 = sbr.rel (0) target = $region13
    $region12: #{tpu_custom_call.1} parent=1 // pred_region
      _
    $region13: #{tpu_custom_call.1} parent=1 // pred_fallthru
      _
    %v16 = vld [vmem:[%s0] sm:$0xff]
    %v17 = vld [vmem:[%s0 + $0x8] sm:$0xff]
    %v18 = vld [vmem:[%s0 + $0x10] sm:$0xff]
    %v19 = vld [vmem:[%s0 + $0x18] sm:$0xff]
    %v20 = vld [vmem:[%s0 + $0x20] sm:$0xff]
    %v21 = vld [vmem:[%s0 + $0x28] sm:$0xff]
    %v22 = vld [vmem:[%s0 + $0x30] sm:$0xff]
    %v23 = vld [vmem:[%s0 + $0x38] sm:$0xff]
    %v24 = vld [vmem:[%s0 + $0x40] sm:$0xff]
    %v25 = vld [vmem:[%s0 + $0x48] sm:$0xff]
    %v26 = vld [vmem:[%s0 + $0x50] sm:$0xff]
    %v27 = vld [vmem:[%s0 + $0x58] sm:$0xff]
    %v28 = vld [vmem:[%s0 + $0x60] sm:$0xff]
    %v29 = vld [vmem:[%s0 + $0x68] sm:$0xff]
    %v30 = vld [vmem:[%s0 + $0x70] sm:$0xff]
    %v31 = vld [vmem:[%s0 + $0x78] sm:$0xff]
    %v32 = vld [vmem:[%s0 + $0x80] sm:$0xff]
    %v33 = vld [vmem:[%s0 + $0x88] sm:$0xff]
    %v34 = vld [vmem:[%s0 + $0x90] sm:$0xff]
    %v35 = vld [vmem:[%s0 + $0x98] sm:$0xff]
    %v36 = vld [vmem:[%s0 + $0xa0] sm:$0xff]
    %v37 = vld [vmem:[%s0 + $0xa8] sm:$0xff]
    %v38 = vld [vmem:[%s0 + $0xb0] sm:$0xff]
    %v39 = vld [vmem:[%s0 + $0xb8] sm:$0xff]
    %v40 = vld [vmem:[%s0 + $0xc0] sm:$0xff]
    %v41 = vld [vmem:[%s0 + $0xc8] sm:$0xff]
    %v42 = vld [vmem:[%s0 + $0xd0] sm:$0xff]
    %v43 = vld [vmem:[%s0 + $0xd8] sm:$0xff]
    %v44 = vld [vmem:[%s0 + $0xe0] sm:$0xff]
    %v45 = vld [vmem:[%s0 + $0xe8] sm:$0xff]
    %v46 = vld [vmem:[%s0 + $0xf0] sm:$0xff]
    %v47 = vld [vmem:[%s0 + $0xf8] sm:$0xff]
    %v48 = vld [vmem:[%s0 + $0x100] sm:$0xff]
    %v49 = vld [vmem:[%s0 + $0x108] sm:$0xff]
    %v50 = vld [vmem:[%s0 + $0x110] sm:$0xff]
    %v51 = vld [vmem:[%s0 + $0x118] sm:$0xff]
    %v52 = vld [vmem:[%s0 + $0x120] sm:$0xff]
    %v53 = vld [vmem:[%s0 + $0x128] sm:$0xff]
    %v54 = vld [vmem:[%s0 + $0x130] sm:$0xff]
    %v55 = vld [vmem:[%s0 + $0x138] sm:$0xff]
    %v56 = vld [vmem:[%s0 + $0x140] sm:$0xff]
    %v57 = vld [vmem:[%s0 + $0x148] sm:$0xff]
    %v58 = vld [vmem:[%s0 + $0x150] sm:$0xff]
    %v59 = vld [vmem:[%s0 + $0x158] sm:$0xff]
    %v60 = vld [vmem:[%s0 + $0x160] sm:$0xff]
    %v61 = vld [vmem:[%s0 + $0x168] sm:$0xff]
    %v62 = vld [vmem:[%s0 + $0x170] sm:$0xff]
    %v63 = vld [vmem:[%s0 + $0x178] sm:$0xff]
    %v64 = vld [vmem:[%s0 + $0x180] sm:$0xff]
    %v65 = vld [vmem:[%s0 + $0x188] sm:$0xff]
    %v66 = vld [vmem:[%s0 + $0x190] sm:$0xff]
    %v67 = vld [vmem:[%s0 + $0x198] sm:$0xff]
    %v68 = vld [vmem:[%s0 + $0x1a0] sm:$0xff]
    %v69 = vld [vmem:[%s0 + $0x1a8] sm:$0xff]
    %v70 = vld [vmem:[%s0 + $0x1b0] sm:$0xff]
    %v71 = vld [vmem:[%s0 + $0x1b8] sm:$0xff]
    %v72 = vld [vmem:[%s0 + $0x1c0] sm:$0xff]
    %v73 = vld [vmem:[%s0 + $0x1c8] sm:$0xff]
    %v74 = vld [vmem:[%s0 + $0x1d0] sm:$0xff]
    %v75 = vld [vmem:[%s0 + $0x1d8] sm:$0xff]
    %v76 = vld [vmem:[%s0 + $0x1e0] sm:$0xff]
    %v77 = vld [vmem:[%s0 + $0x1e8] sm:$0xff]
    %v78 = vld [vmem:[%s0 + $0x1f0] sm:$0xff]
    %v79 = vld [vmem:[%s0 + $0x1f8] sm:$0xff]
    %v80 = vpack.c.bf16 %v17, %v16
    %v81 = vpack.c.bf16 %v19, %v18
    %v82 = vpack.c.bf16 %v21, %v20
    %v83 = vpack.c.bf16 %v23, %v22
    %v84 = vpack.c.bf16 %v25, %v24
    %v85 = vpack.c.bf16 %v27, %v26
    %v86 = vpack.c.bf16 %v29, %v28
    %v87 = vpack.c.bf16 %v31, %v30
    %v88 = vpack.c.bf16 %v33, %v32
    %v89 = vpack.c.bf16 %v35, %v34
    %v90 = vpack.c.bf16 %v37, %v36
    %v91 = vpack.c.bf16 %v39, %v38
    %v92 = vpack.c.bf16 %v41, %v40
    %v93 = vpack.c.bf16 %v43, %v42
    %v94 = vpack.c.bf16 %v45, %v44
    %v95 = vpack.c.bf16 %v47, %v46
    %v96 = vpack.c.bf16 %v49, %v48
    %v97 = vpack.c.bf16 %v51, %v50
    %v98 = vpack.c.bf16 %v53, %v52
    %v99 = vpack.c.bf16 %v55, %v54
    %v100 = vpack.c.bf16 %v57, %v56
    %v101 = vpack.c.bf16 %v59, %v58
    %v102 = vpack.c.bf16 %v61, %v60
    %v103 = vpack.c.bf16 %v63, %v62
    %v104 = vpack.c.bf16 %v65, %v64
    %v105 = vpack.c.bf16 %v67, %v66
    %v106 = vpack.c.bf16 %v69, %v68
    %v107 = vpack.c.bf16 %v71, %v70
    %v108 = vpack.c.bf16 %v73, %v72
    %v109 = vpack.c.bf16 %v75, %v74
    %v110 = vpack.c.bf16 %v77, %v76
    %v111 = vpack.c.bf16 %v79, %v78
    %v112 = vld [vmem:[%s1] sm:$0x1]
    %v113 = vld [vmem:[%s2] sm:$0x3]
    %115 = vset.pattern.permute.xlu0 0
    %116 = vperm.xlu0 %115, %v113
    %v117 = vpop.permute.xlu0 %116
    %vm119 = vcmask 523264
    %v121 = vsel %vm119, %v112, 0
    %v124 = vsel %vm119, %v80, 0
    %v127 = vsel %vm119, %v81, 0
    %v130 = vsel %vm119, %v82, 0
    %v133 = vsel %vm119, %v83, 0
    %v136 = vsel %vm119, %v84, 0
    %v139 = vsel %vm119, %v85, 0
    %v142 = vsel %vm119, %v86, 0
    %v145 = vsel %vm119, %v87, 0
    %v148 = vsel %vm119, %v88, 0
    %v151 = vsel %vm119, %v89, 0
    %v154 = vsel %vm119, %v90, 0
    %v157 = vsel %vm119, %v91, 0
    %v160 = vsel %vm119, %v92, 0
    %v163 = vsel %vm119, %v93, 0
    %v166 = vsel %vm119, %v94, 0
    %v169 = vsel %vm119, %v95, 0
    %v172 = vsel %vm119, %v96, 0
    %v175 = vsel %vm119, %v97, 0
    %v178 = vsel %vm119, %v98, 0
    %v181 = vsel %vm119, %v99, 0
    %v184 = vsel %vm119, %v100, 0
    %v187 = vsel %vm119, %v101, 0
    %v190 = vsel %vm119, %v102, 0
    %v193 = vsel %vm119, %v103, 0
    %v196 = vsel %vm119, %v104, 0
    %v199 = vsel %vm119, %v105, 0
    %v202 = vsel %vm119, %v106, 0
    %v205 = vsel %vm119, %v107, 0
    %v208 = vsel %vm119, %v108, 0
    %v211 = vsel %vm119, %v109, 0
    %v214 = vsel %vm119, %v110, 0
    %v217 = vsel %vm119, %v111, 0
    %219 = vmatprep.subr.bf16.mxu0 0
    %220 = vmatpush1.bf16.xpose.msra.mxu0 %v124
    %221 = vmatprep.subr.bf16.mxu0 0
    %222 = vmatpush1.bf16.xpose.msra.mxu0 %v127
    %223 = vmatprep.subr.bf16.mxu0 0
    %224 = vmatpush1.bf16.xpose.msra.mxu0 %v130
    %225 = vmatprep.subr.bf16.mxu0 0
    %226 = vmatpush1.bf16.xpose.msra.mxu0 %v133
    %227 = vmatprep.subr.bf16.mxu0 0
    %228 = vmatpush1.bf16.xpose.msra.mxu0 %v136
    %229 = vmatprep.subr.bf16.mxu0 0
    %230 = vmatpush1.bf16.xpose.msra.mxu0 %v139
    %231 = vmatprep.subr.bf16.mxu0 0
    %232 = vmatpush1.bf16.xpose.msra.mxu0 %v142
    %233 = vmatprep.subr.bf16.mxu0 0
    %234 = vmatpush1.bf16.xpose.msra.mxu0 %v145
    %235 = vmatprep.subr.bf16.mxu0 0
    %236 = vmatpush1.bf16.xpose.msra.mxu0 %v148
    %237 = vmatprep.subr.bf16.mxu0 0
    %238 = vmatpush1.bf16.xpose.msra.mxu0 %v151
    %239 = vmatprep.subr.bf16.mxu0 0
    %240 = vmatpush1.bf16.xpose.msra.mxu0 %v154
    %241 = vmatprep.subr.bf16.mxu0 0
    %242 = vmatpush1.bf16.xpose.msra.mxu0 %v157
    %243 = vmatprep.subr.bf16.mxu0 0
    %244 = vmatpush1.bf16.xpose.msra.mxu0 %v160
    %245 = vmatprep.subr.bf16.mxu0 0
    %246 = vmatpush1.bf16.xpose.msra.mxu0 %v163
    %247 = vmatprep.subr.bf16.mxu0 0
    %248 = vmatpush1.bf16.xpose.msra.mxu0 %v166
    %249 = vmatprep.subr.bf16.mxu0 0
    %250 = vmatpush1.bf16.xpose.msra.mxu0 %v169
    %251 = vmatprep.mubr.bf16.mxu0 0
    %252 = vmatmul.mubr.bf16.gmra.mrb[0].mxu0 %v121
    %v253 = vpop.f32.mrb[0].mxu0
    %v254 = vadd.f32 %v117, %v253
    %v255 = vpop.f32.mrb[0].mxu0
    %v256 = vadd.f32 %v117, %v255
    %v257 = vpop.f32.mrb[0].mxu0
    %v258 = vpop.f32.mrb[0].mxu0
    %259 = vdwg.mxu0
    %260 = vmatprep.subr.bf16.mxu0 0
    %261 = vmatpush1.bf16.xpose.msra.mxu0 %v172
    %262 = vmatprep.subr.bf16.mxu0 0
    %263 = vmatpush1.bf16.xpose.msra.mxu0 %v175
    %264 = vmatprep.subr.bf16.mxu0 0
    %265 = vmatpush1.bf16.xpose.msra.mxu0 %v178
    %266 = vmatprep.subr.bf16.mxu0 0
    %267 = vmatpush1.bf16.xpose.msra.mxu0 %v181
    %268 = vmatprep.subr.bf16.mxu0 0
    %269 = vmatpush1.bf16.xpose.msra.mxu0 %v184
    %270 = vmatprep.subr.bf16.mxu0 0
    %271 = vmatpush1.bf16.xpose.msra.mxu0 %v187
    %272 = vmatprep.subr.bf16.mxu0 0
    %273 = vmatpush1.bf16.xpose.msra.mxu0 %v190
    %274 = vmatprep.subr.bf16.mxu0 0
    %275 = vmatpush1.bf16.xpose.msra.mxu0 %v193
    %276 = vmatprep.subr.bf16.mxu0 0
    %277 = vmatpush1.bf16.xpose.msra.mxu0 %v196
    %278 = vmatprep.subr.bf16.mxu0 0
    %279 = vmatpush1.bf16.xpose.msra.mxu0 %v199
    %280 = vmatprep.subr.bf16.mxu0 0
    %281 = vmatpush1.bf16.xpose.msra.mxu0 %v202
    %282 = vmatprep.subr.bf16.mxu0 0
    %283 = vmatpush1.bf16.xpose.msra.mxu0 %v205
    %284 = vmatprep.subr.bf16.mxu0 0
    %285 = vmatpush1.bf16.xpose.msra.mxu0 %v208
    %286 = vmatprep.subr.bf16.mxu0 0
    %287 = vmatpush1.bf16.xpose.msra.mxu0 %v211
    %288 = vmatprep.subr.bf16.mxu0 0
    %289 = vmatpush1.bf16.xpose.msra.mxu0 %v214
    %290 = vmatprep.subr.bf16.mxu0 0
    %291 = vmatpush1.bf16.xpose.msra.mxu0 %v217
    %292 = vmatprep.mubr.bf16.mxu0 0
    %293 = vmatmul.mubr.bf16.gmra.mrb[0].mxu0 %v121
    %v294 = vpop.f32.mrb[0].mxu0
    %v295 = vadd.f32 %v117, %v294
    %v296 = vpop.f32.mrb[0].mxu0
    %v297 = vadd.f32 %v117, %v296
    %v298 = vpop.f32.mrb[0].mxu0
    %v299 = vpop.f32.mrb[0].mxu0
    %300 = vdwg.mxu0
    %v305 = vcombine.low %v254, %v256
    %v306 = vcombine.low %v295, %v297
    %v308 = vunpack.c.l.s4 1983009808
    %v309 = vunpack.c.0.s8 %v308
    %v310 = vlaneseq
    %v311 = vshrl.u32 %v310, 7
    %v312 = vsub.s32 %v309, %v311
    %v313 = vrot.slane %v305, %v312
    %v315 = vunpack.c.l.s4 1983009808
    %v316 = vunpack.c.0.s8 %v315
    %v317 = vlaneseq
    %v318 = vshrl.u32 %v317, 7
    %v319 = vsub.s32 %v316, %v318
    %v320 = vrot.slane %v306, %v319
    %v321 = vcombine.low %v313, %v320
    %323 = vst [vmem:[#allocation2] sm:$0xff] %v321
    // Predicated region
    $region14: #{tpu_custom_call.1} parent=1 // pred_check
      _
    $region15: #{tpu_custom_call.1} parent=1 // pred_check_branch
      %325 = sbr.rel (0) target = $region17
    $region16: #{tpu_custom_call.1} parent=1 // pred_region
      %s327 = ssub.s32 128, 128
      %328 = vsyncadd [#allocation3], %s327
      %s330 = sshll.u32 [#allocation2], 4
      %s331 = int_to_ptr.vmem [resolvable:$true] %s330
      %333 = dma.vmem_to_hbm [thread:$0]  %s331, 128, %s3, [#allocation3]
    $region17: #{tpu_custom_call.1} parent=1 // pred_fallthru
      _
    // Predicated region
    $region18: #{tpu_custom_call.1} parent=1 // pred_check
      _
    $region19: #{tpu_custom_call.1} parent=1 // pred_check_branch
      %335 = sbr.rel (0) target = $region21
    $region20: #{tpu_custom_call.1} parent=1 // pred_region
      %336 = dma.done [#allocation3], 128
    $region21: #{tpu_custom_call.1} parent=1 // pred_fallthru
      _
    %337 = vsyncpa [#allocation3], 1

</llo_original>
